<compile_context>
chip_gen: v6e
topology: v6e:2x2x1
jax: 0.10.0
libtpu: 0.0.40
codegen_flags: <defaults>
</compile_context>

<pallas_src>
import functools

import jax
import jax.numpy as jnp
from jax import lax
from jax.experimental import pallas as pl
from jax.experimental.pallas import tpu as pltpu


def _round_up(x: int, m: int) -> int:
    return ((x + m - 1) // m) * m


def _lane_fold(v):
    """(TB, TN) -> (TB, 128): pairwise-tree sum of 128-lane chunks (VPU adds only)."""
    tn = v.shape[1]
    chunks = [v[:, j * 128:(j + 1) * 128] for j in range(tn // 128)]
    while len(chunks) > 1:
        nxt = [a + b for a, b in zip(chunks[0::2], chunks[1::2])]
        if len(chunks) % 2:
            nxt.append(chunks[-1])
        chunks = nxt
    return chunks[0]


def _neg_pearson_kernel(preds_ref, labels_ref, out_ref,
                        sx, sy, sxy, sx2, sy2, *, n, tn):
    """Accumulate per-row partial sums over sequence tiles; finalize on last tile."""
    k = pl.program_id(1)  # sequence-tile index (reduction axis, innermost)

    @pl.when(k == 0)
    def _init():
        zeros = jnp.zeros_like(sx[...])
        sx[...] = zeros
        sy[...] = zeros
        sxy[...] = zeros
        sx2[...] = zeros
        sy2[...] = zeros

    x = preds_ref[...].astype(jnp.float32)   # (TB, TN)
    y = labels_ref[...].astype(jnp.float32)  # (TB, TN)

    if n % tn != 0:
        # Ragged sequence tail (compile-time gated): zero out lanes past the
        # true length.  For non-last tiles limit >= tn so the mask is all-true.
        lane = lax.broadcasted_iota(jnp.int32, x.shape, 1)
        limit = n - k * tn
        valid = lane < limit
        x = jnp.where(valid, x, 0.0)
        y = jnp.where(valid, y, 0.0)

    sx[...] += _lane_fold(x)
    sy[...] += _lane_fold(y)
    sxy[...] += _lane_fold(x * y)
    sx2[...] += _lane_fold(x * x)
    sy2[...] += _lane_fold(y * y)

    @pl.when(k == pl.num_programs(1) - 1)
    def _finalize():
        n_f = jnp.float32(n)  # full (unmasked) sequence length, NOT tile width
        s_x = jnp.sum(sx[...], axis=1, keepdims=True)    # (TB, 1) — one XLU reduce
        s_y = jnp.sum(sy[...], axis=1, keepdims=True)
        s_xy = jnp.sum(sxy[...], axis=1, keepdims=True)
        s_x2 = jnp.sum(sx2[...], axis=1, keepdims=True)
        s_y2 = jnp.sum(sy2[...], axis=1, keepdims=True)

        num = n_f * s_xy - s_x * s_y
        var_x = n_f * s_x2 - s_x * s_x
        var_y = n_f * s_y2 - s_y * s_y
        # rsqrt (EUP slot) + multiply instead of sqrt + vector divide.
        pearson = num * lax.rsqrt(var_x * var_y)
        # Lane-dense store: broadcast the per-row scalar across all 128 lanes.
        out_ref[...] = jnp.broadcast_to(1.0 - pearson, out_ref.shape)


def neg_pearson(preds: jax.Array, labels: jax.Array) -> jax.Array:
    """Pallas-backed Neg_Pearson loss. preds/labels: (B, N). Returns f32 scalar."""
    assert preds.shape == labels.shape and preds.ndim == 2
    B, N = preds.shape

    # Sequence tile: multiple of 128 lanes, capped at 2048 (double-buffered
    # input footprint stays ~8 MiB at TB=256 — safe on v5e/v6e/v7x defaults).
    TN = min(2048, 128 * pl.cdiv(N, 128))

    # Batch tile: whole batch if tiny (block == full dim is always legal);
    # otherwise split into >= 2 tiles of <= 256 rows (multiple of 8) so the
    # 'parallel' batch axis can shard across v7x's two TensorCores.
    if B <= 8:
        TB = B
    else:
        TB = min(256, _round_up(pl.cdiv(B, 2), 8))

    n_b = pl.cdiv(B, TB)
    n_k = pl.cdiv(N, TN)
    B_out = n_b * TB  # ragged batch rows produce garbage, sliced away below

    kernel = functools.partial(_neg_pearson_kernel, n=N, tn=TN)

    itemsize = jnp.dtype(preds.dtype).itemsize
    cost = pl.CostEstimate(
        flops=8 * B * N,
        transcendentals=B,
        bytes_accessed=2 * B * N * itemsize + B_out * 128 * 4,
    )

    per_row = pl.pallas_call(
        kernel,
        out_shape=jax.ShapeDtypeStruct((B_out, 128), jnp.float32),
        grid_spec=pltpu.PrefetchScalarGridSpec(
            num_scalar_prefetch=0,
            grid=(n_b, n_k),
            in_specs=[
                pl.BlockSpec((TB, TN), lambda i, k: (i, k)),
                pl.BlockSpec((TB, TN), lambda i, k: (i, k)),
            ],
            out_specs=pl.BlockSpec((TB, 128), lambda i, k: (i, 0)),
            scratch_shapes=[pltpu.VMEM((TB, 128), jnp.float32) for _ in range(5)],
        ),
        compiler_params=pltpu.CompilerParams(
            dimension_semantics=("parallel", "arbitrary"),
        ),
        cost_estimate=cost,
    )(preds, labels)

    # mean over real batch rows of (1 - pearson_b); ragged rows discarded.
    return jnp.mean(per_row[:B, 0])


def _neg_pearson_ref(preds, labels):
    # Pure-JAX reference mirroring the PyTorch loop.
    n = preds.shape[1]
    preds = preds.astype(jnp.float32)
    labels = labels.astype(jnp.float32)
    sx = jnp.sum(preds, axis=1)
    sy = jnp.sum(labels, axis=1)
    sxy = jnp.sum(preds * labels, axis=1)
    sx2 = jnp.sum(preds ** 2, axis=1)
    sy2 = jnp.sum(labels ** 2, axis=1)
    pearson = (n * sxy - sx * sy) / jnp.sqrt(
        (n * sx2 - sx ** 2) * (n * sy2 - sy ** 2))
    return jnp.mean(1.0 - pearson)


if __name__ == "__main__":
    key = jax.random.PRNGKey(0)
    k1, k2, k3, k4, k5, k6 = jax.random.split(key, 6)

    # Case 1: tile-aligned sequence, tiny batch (single block, no masking path).
    B1, N1 = 2, 1024
    p1 = jax.random.normal(k1, (B1, N1), dtype=jnp.float32)
    l1 = 0.5 * p1 + 0.1 * jax.random.normal(k2, (B1, N1), dtype=jnp.float32)

    # Case 2: ragged sequence length (in-kernel tail masking, no jnp.pad).
    B2, N2 = 3, 300
    p2 = jax.random.normal(k3, (B2, N2), dtype=jnp.float32)
    l2 = jax.random.normal(k4, (B2, N2), dtype=jnp.float32)

    # Case 3: ragged batch AND sequence (2 batch tiles, garbage-row slicing).
    B3, N3 = 20, 520
    p3 = jax.random.normal(k5, (B3, N3), dtype=jnp.float32)
    l3 = -0.3 * p3 + 0.2 * jax.random.normal(k6, (B3, N3), dtype=jnp.float32)

    for p, l in ((p1, l1), (p2, l2), (p3, l3)):
        out = neg_pearson(p, l)
        jax.block_until_ready(out)
        ref = _neg_pearson_ref(p, l)
        assert jnp.allclose(out, ref, rtol=1e-4, atol=1e-5), (out, ref)

    print("KERNEL_OK")
</pallas_src>

<mosaic_0001>
module attributes {stable_mosaic.version = 11 : i64} {
  func.func @_neg_pearson_kernel(%arg0: i32, %arg1: i32, %arg2: memref<2x1024xf32, #tpu.memory_space<vmem>>, %arg3: memref<2x1024xf32, #tpu.memory_space<vmem>>, %arg4: memref<2x128xf32, #tpu.memory_space<vmem>>, %arg5: memref<2x128xf32, #tpu.memory_space<vmem>>, %arg6: memref<2x128xf32, #tpu.memory_space<vmem>>, %arg7: memref<2x128xf32, #tpu.memory_space<vmem>>, %arg8: memref<2x128xf32, #tpu.memory_space<vmem>>, %arg9: memref<2x128xf32, #tpu.memory_space<vmem>>) attributes {dimension_semantics = [#tpu.dimension_semantics<parallel>, #tpu.dimension_semantics<arbitrary>], iteration_bounds = array<i64: 1, 1>, scalar_prefetch = 0 : i64, scratch_operands = 5 : i64, tpu.core_type = #tpu.core_type<tc>, window_params = [{transform_indices = @transform_0, window_bounds = array<i64: 2, 1024>}, {transform_indices = @transform_1, window_bounds = array<i64: 2, 1024>}, {transform_indices = @transform_2, window_bounds = array<i64: 2, 128>}]} {
    %c0_i32 = arith.constant 0 : i32
    %0 = arith.cmpi eq, %arg1, %c0_i32 : i32
    %1 = arith.extui %0 : i1 to i32
    %c0_i32_0 = arith.constant 0 : i32
    %2 = arith.cmpi ne, %1, %c0_i32_0 : i32
    scf.if %2 {
      %cst = arith.constant 0.000000e+00 : f32
      %101 = vector.broadcast %cst : f32 to vector<2x128xf32>
      %c0_26 = arith.constant 0 : index
      %c0_27 = arith.constant 0 : index
      %102 = vector.load %arg5[%c0_26, %c0_27] : memref<2x128xf32, #tpu.memory_space<vmem>>, vector<2x128xf32>
      tpu.vector_store %arg5[%c0_26, %c0_27], %101 {strides = array<i32>} : memref<2x128xf32, #tpu.memory_space<vmem>>, vector<2x128xf32>,
      %c0_28 = arith.constant 0 : index
      %c0_29 = arith.constant 0 : index
      %103 = vector.load %arg6[%c0_28, %c0_29] : memref<2x128xf32, #tpu.memory_space<vmem>>, vector<2x128xf32>
      tpu.vector_store %arg6[%c0_28, %c0_29], %101 {strides = array<i32>} : memref<2x128xf32, #tpu.memory_space<vmem>>, vector<2x128xf32>,
      %c0_30 = arith.constant 0 : index
      %c0_31 = arith.constant 0 : index
      %104 = vector.load %arg7[%c0_30, %c0_31] : memref<2x128xf32, #tpu.memory_space<vmem>>, vector<2x128xf32>
      tpu.vector_store %arg7[%c0_30, %c0_31], %101 {strides = array<i32>} : memref<2x128xf32, #tpu.memory_space<vmem>>, vector<2x128xf32>,
      %c0_32 = arith.constant 0 : index
      %c0_33 = arith.constant 0 : index
      %105 = vector.load %arg8[%c0_32, %c0_33] : memref<2x128xf32, #tpu.memory_space<vmem>>, vector<2x128xf32>
      tpu.vector_store %arg8[%c0_32, %c0_33], %101 {strides = array<i32>} : memref<2x128xf32, #tpu.memory_space<vmem>>, vector<2x128xf32>,
      %c0_34 = arith.constant 0 : index
      %c0_35 = arith.constant 0 : index
      %106 = vector.load %arg9[%c0_34, %c0_35] : memref<2x128xf32, #tpu.memory_space<vmem>>, vector<2x128xf32>
      tpu.vector_store %arg9[%c0_34, %c0_35], %101 {strides = array<i32>} : memref<2x128xf32, #tpu.memory_space<vmem>>, vector<2x128xf32>,
    } else {
    }
    %c0 = arith.constant 0 : index
    %c0_1 = arith.constant 0 : index
    %3 = vector.load %arg2[%c0, %c0_1] : memref<2x1024xf32, #tpu.memory_space<vmem>>, vector<2x1024xf32>
    %c0_2 = arith.constant 0 : index
    %c0_3 = arith.constant 0 : index
    %4 = vector.load %arg3[%c0_2, %c0_3] : memref<2x1024xf32, #tpu.memory_space<vmem>>, vector<2x1024xf32>
    %c0_4 = arith.constant 0 : index
    %c0_5 = arith.constant 0 : index
    %5 = vector.load %arg5[%c0_4, %c0_5] : memref<2x128xf32, #tpu.memory_space<vmem>>, vector<2x128xf32>
    %6 = vector.extract_strided_slice %3 {offsets = [0, 0], sizes = [2, 128], strides = [1, 1]} : vector<2x1024xf32> to vector<2x128xf32>
    %7 = vector.extract_strided_slice %3 {offsets = [0, 128], sizes = [2, 128], strides = [1, 1]} : vector<2x1024xf32> to vector<2x128xf32>
    %8 = vector.extract_strided_slice %3 {offsets = [0, 256], sizes = [2, 128], strides = [1, 1]} : vector<2x1024xf32> to vector<2x128xf32>
    %9 = vector.extract_strided_slice %3 {offsets = [0, 384], sizes = [2, 128], strides = [1, 1]} : vector<2x1024xf32> to vector<2x128xf32>
    %10 = vector.extract_strided_slice %3 {offsets = [0, 512], sizes = [2, 128], strides = [1, 1]} : vector<2x1024xf32> to vector<2x128xf32>
    %11 = vector.extract_strided_slice %3 {offsets = [0, 640], sizes = [2, 128], strides = [1, 1]} : vector<2x1024xf32> to vector<2x128xf32>
    %12 = vector.extract_strided_slice %3 {offsets = [0, 768], sizes = [2, 128], strides = [1, 1]} : vector<2x1024xf32> to vector<2x128xf32>
    %13 = vector.extract_strided_slice %3 {offsets = [0, 896], sizes = [2, 128], strides = [1, 1]} : vector<2x1024xf32> to vector<2x128xf32>
    %14 = arith.addf %6, %7 : vector<2x128xf32>
    %15 = arith.addf %8, %9 : vector<2x128xf32>
    %16 = arith.addf %10, %11 : vector<2x128xf32>
    %17 = arith.addf %12, %13 : vector<2x128xf32>
    %18 = arith.addf %14, %15 : vector<2x128xf32>
    %19 = arith.addf %16, %17 : vector<2x128xf32>
    %20 = arith.addf %18, %19 : vector<2x128xf32>
    %21 = arith.addf %5, %20 : vector<2x128xf32>
    %c0_6 = arith.constant 0 : index
    %c0_7 = arith.constant 0 : index
    %22 = vector.load %arg5[%c0_6, %c0_7] : memref<2x128xf32, #tpu.memory_space<vmem>>, vector<2x128xf32>
    tpu.vector_store %arg5[%c0_6, %c0_7], %21 {strides = array<i32>} : memref<2x128xf32, #tpu.memory_space<vmem>>, vector<2x128xf32>,
    %c0_8 = arith.constant 0 : index
    %c0_9 = arith.constant 0 : index
    %23 = vector.load %arg6[%c0_8, %c0_9] : memref<2x128xf32, #tpu.memory_space<vmem>>, vector<2x128xf32>
    %24 = vector.extract_strided_slice %4 {offsets = [0, 0], sizes = [2, 128], strides = [1, 1]} : vector<2x1024xf32> to vector<2x128xf32>
    %25 = vector.extract_strided_slice %4 {offsets = [0, 128], sizes = [2, 128], strides = [1, 1]} : vector<2x1024xf32> to vector<2x128xf32>
    %26 = vector.extract_strided_slice %4 {offsets = [0, 256], sizes = [2, 128], strides = [1, 1]} : vector<2x1024xf32> to vector<2x128xf32>
    %27 = vector.extract_strided_slice %4 {offsets = [0, 384], sizes = [2, 128], strides = [1, 1]} : vector<2x1024xf32> to vector<2x128xf32>
    %28 = vector.extract_strided_slice %4 {offsets = [0, 512], sizes = [2, 128], strides = [1, 1]} : vector<2x1024xf32> to vector<2x128xf32>
    %29 = vector.extract_strided_slice %4 {offsets = [0, 640], sizes = [2, 128], strides = [1, 1]} : vector<2x1024xf32> to vector<2x128xf32>
    %30 = vector.extract_strided_slice %4 {offsets = [0, 768], sizes = [2, 128], strides = [1, 1]} : vector<2x1024xf32> to vector<2x128xf32>
    %31 = vector.extract_strided_slice %4 {offsets = [0, 896], sizes = [2, 128], strides = [1, 1]} : vector<2x1024xf32> to vector<2x128xf32>
    %32 = arith.addf %24, %25 : vector<2x128xf32>
    %33 = arith.addf %26, %27 : vector<2x128xf32>
    %34 = arith.addf %28, %29 : vector<2x128xf32>
    %35 = arith.addf %30, %31 : vector<2x128xf32>
    %36 = arith.addf %32, %33 : vector<2x128xf32>
    %37 = arith.addf %34, %35 : vector<2x128xf32>
    %38 = arith.addf %36, %37 : vector<2x128xf32>
    %39 = arith.addf %23, %38 : vector<2x128xf32>
    %c0_10 = arith.constant 0 : index
    %c0_11 = arith.constant 0 : index
    %40 = vector.load %arg6[%c0_10, %c0_11] : memref<2x128xf32, #tpu.memory_space<vmem>>, vector<2x128xf32>
    tpu.vector_store %arg6[%c0_10, %c0_11], %39 {strides = array<i32>} : memref<2x128xf32, #tpu.memory_space<vmem>>, vector<2x128xf32>,
    %c0_12 = arith.constant 0 : index
    %c0_13 = arith.constant 0 : index
    %41 = vector.load %arg7[%c0_12, %c0_13] : memref<2x128xf32, #tpu.memory_space<vmem>>, vector<2x128xf32>
    %42 = arith.mulf %3, %4 : vector<2x1024xf32>
    %43 = vector.extract_strided_slice %42 {offsets = [0, 0], sizes = [2, 128], strides = [1, 1]} : vector<2x1024xf32> to vector<2x128xf32>
    %44 = vector.extract_strided_slice %42 {offsets = [0, 128], sizes = [2, 128], strides = [1, 1]} : vector<2x1024xf32> to vector<2x128xf32>
    %45 = vector.extract_strided_slice %42 {offsets = [0, 256], sizes = [2, 128], strides = [1, 1]} : vector<2x1024xf32> to vector<2x128xf32>
    %46 = vector.extract_strided_slice %42 {offsets = [0, 384], sizes = [2, 128], strides = [1, 1]} : vector<2x1024xf32> to vector<2x128xf32>
    %47 = vector.extract_strided_slice %42 {offsets = [0, 512], sizes = [2, 128], strides = [1, 1]} : vector<2x1024xf32> to vector<2x128xf32>
    %48 = vector.extract_strided_slice %42 {offsets = [0, 640], sizes = [2, 128], strides = [1, 1]} : vector<2x1024xf32> to vector<2x128xf32>
    %49 = vector.extract_strided_slice %42 {offsets = [0, 768], sizes = [2, 128], strides = [1, 1]} : vector<2x1024xf32> to vector<2x128xf32>
    %50 = vector.extract_strided_slice %42 {offsets = [0, 896], sizes = [2, 128], strides = [1, 1]} : vector<2x1024xf32> to vector<2x128xf32>
    %51 = arith.addf %43, %44 : vector<2x128xf32>
    %52 = arith.addf %45, %46 : vector<2x128xf32>
    %53 = arith.addf %47, %48 : vector<2x128xf32>
    %54 = arith.addf %49, %50 : vector<2x128xf32>
    %55 = arith.addf %51, %52 : vector<2x128xf32>
    %56 = arith.addf %53, %54 : vector<2x128xf32>
    %57 = arith.addf %55, %56 : vector<2x128xf32>
    %58 = arith.addf %41, %57 : vector<2x128xf32>
    %c0_14 = arith.constant 0 : index
    %c0_15 = arith.constant 0 : index
    %59 = vector.load %arg7[%c0_14, %c0_15] : memref<2x128xf32, #tpu.memory_space<vmem>>, vector<2x128xf32>
    tpu.vector_store %arg7[%c0_14, %c0_15], %58 {strides = array<i32>} : memref<2x128xf32, #tpu.memory_space<vmem>>, vector<2x128xf32>,
    %c0_16 = arith.constant 0 : index
    %c0_17 = arith.constant 0 : index
    %60 = vector.load %arg8[%c0_16, %c0_17] : memref<2x128xf32, #tpu.memory_space<vmem>>, vector<2x128xf32>
    %61 = arith.mulf %3, %3 : vector<2x1024xf32>
    %62 = vector.extract_strided_slice %61 {offsets = [0, 0], sizes = [2, 128], strides = [1, 1]} : vector<2x1024xf32> to vector<2x128xf32>
    %63 = vector.extract_strided_slice %61 {offsets = [0, 128], sizes = [2, 128], strides = [1, 1]} : vector<2x1024xf32> to vector<2x128xf32>
    %64 = vector.extract_strided_slice %61 {offsets = [0, 256], sizes = [2, 128], strides = [1, 1]} : vector<2x1024xf32> to vector<2x128xf32>
    %65 = vector.extract_strided_slice %61 {offsets = [0, 384], sizes = [2, 128], strides = [1, 1]} : vector<2x1024xf32> to vector<2x128xf32>
    %66 = vector.extract_strided_slice %61 {offsets = [0, 512], sizes = [2, 128], strides = [1, 1]} : vector<2x1024xf32> to vector<2x128xf32>
    %67 = vector.extract_strided_slice %61 {offsets = [0, 640], sizes = [2, 128], strides = [1, 1]} : vector<2x1024xf32> to vector<2x128xf32>
    %68 = vector.extract_strided_slice %61 {offsets = [0, 768], sizes = [2, 128], strides = [1, 1]} : vector<2x1024xf32> to vector<2x128xf32>
    %69 = vector.extract_strided_slice %61 {offsets = [0, 896], sizes = [2, 128], strides = [1, 1]} : vector<2x1024xf32> to vector<2x128xf32>
    %70 = arith.addf %62, %63 : vector<2x128xf32>
    %71 = arith.addf %64, %65 : vector<2x128xf32>
    %72 = arith.addf %66, %67 : vector<2x128xf32>
    %73 = arith.addf %68, %69 : vector<2x128xf32>
    %74 = arith.addf %70, %71 : vector<2x128xf32>
    %75 = arith.addf %72, %73 : vector<2x128xf32>
    %76 = arith.addf %74, %75 : vector<2x128xf32>
    %77 = arith.addf %60, %76 : vector<2x128xf32>
    %c0_18 = arith.constant 0 : index
    %c0_19 = arith.constant 0 : index
    %78 = vector.load %arg8[%c0_18, %c0_19] : memref<2x128xf32, #tpu.memory_space<vmem>>, vector<2x128xf32>
    tpu.vector_store %arg8[%c0_18, %c0_19], %77 {strides = array<i32>} : memref<2x128xf32, #tpu.memory_space<vmem>>, vector<2x128xf32>,
    %c0_20 = arith.constant 0 : index
    %c0_21 = arith.constant 0 : index
    %79 = vector.load %arg9[%c0_20, %c0_21] : memref<2x128xf32, #tpu.memory_space<vmem>>, vector<2x128xf32>
    %80 = arith.mulf %4, %4 : vector<2x1024xf32>
    %81 = vector.extract_strided_slice %80 {offsets = [0, 0], sizes = [2, 128], strides = [1, 1]} : vector<2x1024xf32> to vector<2x128xf32>
    %82 = vector.extract_strided_slice %80 {offsets = [0, 128], sizes = [2, 128], strides = [1, 1]} : vector<2x1024xf32> to vector<2x128xf32>
    %83 = vector.extract_strided_slice %80 {offsets = [0, 256], sizes = [2, 128], strides = [1, 1]} : vector<2x1024xf32> to vector<2x128xf32>
    %84 = vector.extract_strided_slice %80 {offsets = [0, 384], sizes = [2, 128], strides = [1, 1]} : vector<2x1024xf32> to vector<2x128xf32>
    %85 = vector.extract_strided_slice %80 {offsets = [0, 512], sizes = [2, 128], strides = [1, 1]} : vector<2x1024xf32> to vector<2x128xf32>
    %86 = vector.extract_strided_slice %80 {offsets = [0, 640], sizes = [2, 128], strides = [1, 1]} : vector<2x1024xf32> to vector<2x128xf32>
    %87 = vector.extract_strided_slice %80 {offsets = [0, 768], sizes = [2, 128], strides = [1, 1]} : vector<2x1024xf32> to vector<2x128xf32>
    %88 = vector.extract_strided_slice %80 {offsets = [0, 896], sizes = [2, 128], strides = [1, 1]} : vector<2x1024xf32> to vector<2x128xf32>
    %89 = arith.addf %81, %82 : vector<2x128xf32>
    %90 = arith.addf %83, %84 : vector<2x128xf32>
    %91 = arith.addf %85, %86 : vector<2x128xf32>
    %92 = arith.addf %87, %88 : vector<2x128xf32>
    %93 = arith.addf %89, %90 : vector<2x128xf32>
    %94 = arith.addf %91, %92 : vector<2x128xf32>
    %95 = arith.addf %93, %94 : vector<2x128xf32>
    %96 = arith.addf %79, %95 : vector<2x128xf32>
    %c0_22 = arith.constant 0 : index
    %c0_23 = arith.constant 0 : index
    %97 = vector.load %arg9[%c0_22, %c0_23] : memref<2x128xf32, #tpu.memory_space<vmem>>, vector<2x128xf32>
    tpu.vector_store %arg9[%c0_22, %c0_23], %96 {strides = array<i32>} : memref<2x128xf32, #tpu.memory_space<vmem>>, vector<2x128xf32>,
    %c0_i32_24 = arith.constant 0 : i32
    %98 = arith.cmpi eq, %arg1, %c0_i32_24 : i32
    %99 = arith.extui %98 : i1 to i32
    %c0_i32_25 = arith.constant 0 : i32
    %100 = arith.cmpi ne, %99, %c0_i32_25 : i32
    scf.if %100 {
      %c0_26 = arith.constant 0 : index
      %c0_27 = arith.constant 0 : index
      %101 = vector.load %arg5[%c0_26, %c0_27] : memref<2x128xf32, #tpu.memory_space<vmem>>, vector<2x128xf32>
      %cst = arith.constant dense<0.000000e+00> : vector<2xf32>
      %102 = vector.multi_reduction <add>, %101, %cst [1] : vector<2x128xf32> to vector<2xf32>
      %103 = vector.shape_cast %102 : vector<2xf32> to vector<2x1xf32>
      %c0_28 = arith.constant 0 : index
      %c0_29 = arith.constant 0 : index
      %104 = vector.load %arg6[%c0_28, %c0_29] : memref<2x128xf32, #tpu.memory_space<vmem>>, vector<2x128xf32>
      %cst_30 = arith.constant dense<0.000000e+00> : vector<2xf32>
      %105 = vector.multi_reduction <add>, %104, %cst_30 [1] : vector<2x128xf32> to vector<2xf32>
      %106 = vector.shape_cast %105 : vector<2xf32> to vector<2x1xf32>
      %c0_31 = arith.constant 0 : index
      %c0_32 = arith.constant 0 : index
      %107 = vector.load %arg7[%c0_31, %c0_32] : memref<2x128xf32, #tpu.memory_space<vmem>>, vector<2x128xf32>
      %cst_33 = arith.constant dense<0.000000e+00> : vector<2xf32>
      %108 = vector.multi_reduction <add>, %107, %cst_33 [1] : vector<2x128xf32> to vector<2xf32>
      %109 = vector.shape_cast %108 : vector<2xf32> to vector<2x1xf32>
      %c0_34 = arith.constant 0 : index
      %c0_35 = arith.constant 0 : index
      %110 = vector.load %arg8[%c0_34, %c0_35] : memref<2x128xf32, #tpu.memory_space<vmem>>, vector<2x128xf32>
      %cst_36 = arith.constant dense<0.000000e+00> : vector<2xf32>
      %111 = vector.multi_reduction <add>, %110, %cst_36 [1] : vector<2x128xf32> to vector<2xf32>
      %112 = vector.shape_cast %111 : vector<2xf32> to vector<2x1xf32>
      %c0_37 = arith.constant 0 : index
      %c0_38 = arith.constant 0 : index
      %113 = vector.load %arg9[%c0_37, %c0_38] : memref<2x128xf32, #tpu.memory_space<vmem>>, vector<2x128xf32>
      %cst_39 = arith.constant dense<0.000000e+00> : vector<2xf32>
      %114 = vector.multi_reduction <add>, %113, %cst_39 [1] : vector<2x128xf32> to vector<2xf32>
      %115 = vector.shape_cast %114 : vector<2xf32> to vector<2x1xf32>
      %cst_40 = arith.constant 1.024000e+03 : f32
      %116 = vector.broadcast %cst_40 : f32 to vector<2x1xf32>
      %117 = arith.mulf %116, %109 : vector<2x1xf32>
      %118 = arith.mulf %103, %106 : vector<2x1xf32>
      %119 = arith.subf %117, %118 : vector<2x1xf32>
      %cst_41 = arith.constant 1.024000e+03 : f32
      %120 = vector.broadcast %cst_41 : f32 to vector<2x1xf32>
      %121 = arith.mulf %120, %112 : vector<2x1xf32>
      %122 = arith.mulf %103, %103 : vector<2x1xf32>
      %123 = arith.subf %121, %122 : vector<2x1xf32>
      %cst_42 = arith.constant 1.024000e+03 : f32
      %124 = vector.broadcast %cst_42 : f32 to vector<2x1xf32>
      %125 = arith.mulf %124, %115 : vector<2x1xf32>
      %126 = arith.mulf %106, %106 : vector<2x1xf32>
      %127 = arith.subf %125, %126 : vector<2x1xf32>
      %128 = arith.mulf %123, %127 : vector<2x1xf32>
      %129 = math.rsqrt %128 : vector<2x1xf32>
      %130 = arith.mulf %119, %129 : vector<2x1xf32>
      %cst_43 = arith.constant 1.000000e+00 : f32
      %131 = vector.broadcast %cst_43 : f32 to vector<2x1xf32>
      %132 = arith.subf %131, %130 : vector<2x1xf32>
      %133 = vector.shape_cast %132 : vector<2x1xf32> to vector<2x1xf32>
      %134 = vector.broadcast %133 : vector<2x1xf32> to vector<2x128xf32>
      %c0_44 = arith.constant 0 : index
      %c0_45 = arith.constant 0 : index
      %135 = vector.load %arg4[%c0_44, %c0_45] : memref<2x128xf32, #tpu.memory_space<vmem>>, vector<2x128xf32>
      tpu.vector_store %arg4[%c0_44, %c0_45], %134 {strides = array<i32>} : memref<2x128xf32, #tpu.memory_space<vmem>>, vector<2x128xf32>,
    } else {
    }
    return
  }
  func.func @transform_0(%arg0: i32, %arg1: i32) -> (i32, i32) {
    %c0_i32 = arith.constant 0 : i32
    return %arg0, %arg1 : i32, i32
  }
  func.func @transform_1(%arg0: i32, %arg1: i32) -> (i32, i32) {
    %c0_i32 = arith.constant 0 : i32
    return %arg0, %arg1 : i32, i32
  }
  func.func @transform_2(%arg0: i32, %arg1: i32) -> (i32, i32) {
    %c0_i32 = arith.constant 0 : i32
    %c0_i32_0 = arith.constant 0 : i32
    return %arg0, %c0_i32 : i32, i32
  }
}

</mosaic_0001>

<llo_original>
// kernel: tpu_custom_call.1
$region0: #{tpu_custom_call.1}
  #allocation0 [shape = 'u32[]', space=smem, size = 0x4, offset = 0x4, fixed_abs, tag = 'smem constant byte address 0x4 - core index']
  #allocation1 [shape = 'u32[144,128]{1,0:T(1,128)}', space=vmem, size = 0x12000, scoped, tag = 'internal scratch']
  #allocation2 [shape = 'f32[2,128]{1,0:T(2,128)}', space=vmem, size = 0x400, scoped, tag = 'scratch operand']
  #allocation3 [shape = 'f32[2,128]{1,0:T(2,128)}', space=vmem, size = 0x400, scoped, tag = 'scratch operand']
  #allocation4 [shape = 'f32[2,128]{1,0:T(2,128)}', space=vmem, size = 0x400, scoped, tag = 'scratch operand']
  #allocation5 [shape = 'f32[2,128]{1,0:T(2,128)}', space=vmem, size = 0x400, scoped, tag = 'scratch operand']
  #allocation6 [shape = 'f32[2,128]{1,0:T(2,128)}', space=vmem, size = 0x400, scoped, tag = 'scratch operand']
  %s0 = inlined_call_operand.hbm [shape: f32[2,1024], index: 0, kind: input, shape index: {}]
  %s1 = inlined_call_operand.hbm [shape: f32[2,1024], index: 1, kind: input, shape index: {}]
  %s2 = inlined_call_operand.hbm [shape: f32[2,128], index: 2, kind: output, shape index: {}]
  %s3 = sld [smem:[#allocation0]]
  $region34: #{tpu_custom_call.1} parent=0
    _
  %s5 = ssub.s32 1, %s3
  %s6 = scalar_select 0, %s5, %s3
  $region1: #{tpu_custom_call.1} parent=0
    #allocation7 [shape = 'u8[8192]{0}', space=vmem, size = 0x2000, scoped, tag = 'input window, operand 0, single buffered']
    #allocation8 [shape = 's32[1]{0}', space=sflag, size = 0x4, scoped, tag = 'scoped memory for tpu_custom_call.1']
    #allocation9 [shape = 's32[1]{0}', space=sflag, size = 0x4, scoped, tag = 'scoped memory for tpu_custom_call.1']
    #allocation10 [shape = 'u8[8192]{0}', space=vmem, size = 0x2000, scoped, tag = 'input window, operand 1, single buffered']
    #allocation11 [shape = 's32[1]{0}', space=sflag, size = 0x4, scoped, tag = 'scoped memory for tpu_custom_call.1']
    #allocation12 [shape = 'u8[1024]{0}', space=vmem, size = 0x400, scoped, tag = 'output window, operand 0, single buffered']
    %7 = vsyncpa [#allocation8], 0
    %8 = vsyncpa [#allocation11], 0
    %9 = vsyncpa [#allocation9], 0
    // Predicated region
    $region2: #{tpu_custom_call.1} parent=1 // pred_check
      _
    $region3: #{tpu_custom_call.1} parent=1 // pred_check_branch
      %11 = sbr.rel (0) target = $region5
    $region4: #{tpu_custom_call.1} parent=1 // pred_region
      %s13 = ssub.s32 256, 256
      %14 = vsyncadd [#allocation8], %s13
      %s16 = sshll.u32 [#allocation7], 4
      %s17 = int_to_ptr.vmem [resolvable:$true] %s16
      %19 = dma.hbm_to_vmem [thread:$0]  %s0, 256, %s17, [#allocation8]
    $region5: #{tpu_custom_call.1} parent=1 // pred_fallthru
      _
    // Predicated region
    $region6: #{tpu_custom_call.1} parent=1 // pred_check
      _
    $region7: #{tpu_custom_call.1} parent=1 // pred_check_branch
      %21 = sbr.rel (0) target = $region9
    $region8: #{tpu_custom_call.1} parent=1 // pred_region
      %s23 = ssub.s32 256, 256
      %24 = vsyncadd [#allocation11], %s23
      %s26 = sshll.u32 [#allocation10], 4
      %s27 = int_to_ptr.vmem [resolvable:$true] %s26
      %29 = dma.hbm_to_vmem [thread:$0]  %s1, 256, %s27, [#allocation11]
    $region9: #{tpu_custom_call.1} parent=1 // pred_fallthru
      _
    // Predicated region
    $region10: #{tpu_custom_call.1} parent=1 // pred_check
      _
    $region11: #{tpu_custom_call.1} parent=1 // pred_check_branch
      %31 = sbr.rel (0) target = $region13
    $region12: #{tpu_custom_call.1} parent=1 // pred_region
      %32 = dma.done [#allocation8], 256
    $region13: #{tpu_custom_call.1} parent=1 // pred_fallthru
      _
    // Predicated region
    $region14: #{tpu_custom_call.1} parent=1 // pred_check
      _
    $region15: #{tpu_custom_call.1} parent=1 // pred_check_branch
      %34 = sbr.rel (0) target = $region17
    $region16: #{tpu_custom_call.1} parent=1 // pred_region
      %35 = dma.done [#allocation11], 256
    $region17: #{tpu_custom_call.1} parent=1 // pred_fallthru
      _
    %p36 = scmp.eq.s32.totalorder 0, 0
    // Predicated region
    $region18: #{tpu_custom_call.1} parent=1 // pred_check
      %p37 = pneg %p36
    $region19: #{tpu_custom_call.1} parent=1 // pred_check_branch
      %39 = sbr.rel (%p37) target = $region21
    $region20: #{tpu_custom_call.1} parent=1 // pred_region
      %40 = vst [vmem:[#allocation2] sm:$0x3] 0.0
      %41 = vst [vmem:[#allocation3] sm:$0x3] 0.0
      %42 = vst [vmem:[#allocation4] sm:$0x3] 0.0
      %43 = vst [vmem:[#allocation5] sm:$0x3] 0.0
      %44 = vst [vmem:[#allocation6] sm:$0x3] 0.0
    $region21: #{tpu_custom_call.1} parent=1 // pred_fallthru
      _
    %v45 = vld [vmem:[#allocation7] sm:$0xff]
    %v46 = vld [vmem:[#allocation7 + $0x8] sm:$0xff]
    %v47 = vld [vmem:[#allocation10] sm:$0xff]
    %v48 = vld [vmem:[#allocation10 + $0x8] sm:$0xff]
    %v49 = vld [vmem:[#allocation2] sm:$0x3]
    %v51 = vrot.slane %v45, 2
    %v53 = vadd.f32 %v45, %v51
    %v54 = vrot.slane %v45, 4
    %v56 = vrot.slane %v45, 6
    %v58 = vadd.f32 %v54, %v56
    %v60 = vrot.slane %v46, 2
    %v62 = vadd.f32 %v46, %v60
    %v63 = vrot.slane %v46, 4
    %v65 = vrot.slane %v46, 6
    %v67 = vadd.f32 %v63, %v65
    %v68 = vadd.f32 %v53, %v58
    %v69 = vadd.f32 %v62, %v67
    %v70 = vadd.f32 %v68, %v69
    %v71 = vadd.f32 %v49, %v70
    %72 = vst [vmem:[#allocation2] sm:$0x3] %v71
    %v73 = vld [vmem:[#allocation3] sm:$0x3]
    %v75 = vrot.slane %v47, 2
    %v77 = vadd.f32 %v47, %v75
    %v78 = vrot.slane %v47, 4
    %v80 = vrot.slane %v47, 6
    %v82 = vadd.f32 %v78, %v80
    %v84 = vrot.slane %v48, 2
    %v86 = vadd.f32 %v48, %v84
    %v87 = vrot.slane %v48, 4
    %v89 = vrot.slane %v48, 6
    %v91 = vadd.f32 %v87, %v89
    %v92 = vadd.f32 %v77, %v82
    %v93 = vadd.f32 %v86, %v91
    %v94 = vadd.f32 %v92, %v93
    %v95 = vadd.f32 %v73, %v94
    %96 = vst [vmem:[#allocation3] sm:$0x3] %v95
    %v97 = vld [vmem:[#allocation4] sm:$0x3]
    %v98 = vmul.f32 %v45, %v47
    %v99 = vmul.f32 %v46, %v48
    %v101 = vrot.slane %v98, 2
    %v103 = vadd.f32 %v98, %v101
    %v104 = vrot.slane %v98, 4
    %v106 = vrot.slane %v98, 6
    %v108 = vadd.f32 %v104, %v106
    %v110 = vrot.slane %v99, 2
    %v112 = vadd.f32 %v99, %v110
    %v113 = vrot.slane %v99, 4
    %v115 = vrot.slane %v99, 6
    %v117 = vadd.f32 %v113, %v115
    %v118 = vadd.f32 %v103, %v108
    %v119 = vadd.f32 %v112, %v117
    %v120 = vadd.f32 %v118, %v119
    %v121 = vadd.f32 %v97, %v120
    %122 = vst [vmem:[#allocation4] sm:$0x3] %v121
    %v123 = vld [vmem:[#allocation5] sm:$0x3]
    %v124 = vmul.f32 %v45, %v45
    %v125 = vmul.f32 %v46, %v46
    %v127 = vrot.slane %v124, 2
    %v129 = vadd.f32 %v124, %v127
    %v130 = vrot.slane %v124, 4
    %v132 = vrot.slane %v124, 6
    %v134 = vadd.f32 %v130, %v132
    %v136 = vrot.slane %v125, 2
    %v138 = vadd.f32 %v125, %v136
    %v139 = vrot.slane %v125, 4
    %v141 = vrot.slane %v125, 6
    %v143 = vadd.f32 %v139, %v141
    %v144 = vadd.f32 %v129, %v134
    %v145 = vadd.f32 %v138, %v143
    %v146 = vadd.f32 %v144, %v145
    %v147 = vadd.f32 %v123, %v146
    %148 = vst [vmem:[#allocation5] sm:$0x3] %v147
    %v149 = vld [vmem:[#allocation6] sm:$0x3]
    %v150 = vmul.f32 %v47, %v47
    %v151 = vmul.f32 %v48, %v48
    %v153 = vrot.slane %v150, 2
    %v155 = vadd.f32 %v150, %v153
    %v156 = vrot.slane %v150, 4
    %v158 = vrot.slane %v150, 6
    %v160 = vadd.f32 %v156, %v158
    %v162 = vrot.slane %v151, 2
    %v164 = vadd.f32 %v151, %v162
    %v165 = vrot.slane %v151, 4
    %v167 = vrot.slane %v151, 6
    %v169 = vadd.f32 %v165, %v167
    %v170 = vadd.f32 %v155, %v160
    %v171 = vadd.f32 %v164, %v169
    %v172 = vadd.f32 %v170, %v171
    %v173 = vadd.f32 %v149, %v172
    %174 = vst [vmem:[#allocation6] sm:$0x3] %v173
    // Predicated region
    $region22: #{tpu_custom_call.1} parent=1 // pred_check
      %p175 = pneg %p36
    $region23: #{tpu_custom_call.1} parent=1 // pred_check_branch
      %177 = sbr.rel (%p175) target = $region25
    $region24: #{tpu_custom_call.1} parent=1 // pred_region
      %v178 = vld [vmem:[#allocation2] sm:$0x3]
      %vm179 = vcmask 1041408
      %v180 = vsel %vm179, %v178, 0.0
      %181 = vadd.xlane.f32.xlu0 %v180
      %v182 = vpop.xlane.xlu0 %181
      %v183 = vld [vmem:[#allocation3] sm:$0x3]
      %v184 = vsel %vm179, %v183, 0.0
      %185 = vadd.xlane.f32.xlu0 %v184
      %v186 = vpop.xlane.xlu0 %185
      %v187 = vld [vmem:[#allocation4] sm:$0x3]
      %v188 = vsel %vm179, %v187, 0.0
      %189 = vadd.xlane.f32.xlu0 %v188
      %v190 = vpop.xlane.xlu0 %189
      %v191 = vld [vmem:[#allocation5] sm:$0x3]
      %v192 = vsel %vm179, %v191, 0.0
      %193 = vadd.xlane.f32.xlu0 %v192
      %v194 = vpop.xlane.xlu0 %193
      %v195 = vld [vmem:[#allocation6] sm:$0x3]
      %v196 = vsel %vm179, %v195, 0.0
      %197 = vadd.xlane.f32.xlu0 %v196
      %v198 = vpop.xlane.xlu0 %197
      %v199 = vmul.f32 %v190, 1024.0
      %v200 = vmul.f32 %v182, %v186
      %v201 = vsub.f32 %v199, %v200
      %v202 = vmul.f32 %v194, 1024.0
      %v203 = vmul.f32 %v182, %v182
      %v204 = vsub.f32 %v202, %v203
      %v205 = vmul.f32 %v198, 1024.0
      %v206 = vmul.f32 %v186, %v186
      %v207 = vsub.f32 %v205, %v206
      %v208 = vmul.f32 %v204, %v207
      %v209 = vrsqrt.pop %v208
      %v210 = vmul.f32 %v201, %v209
      %v211 = vsub.f32 1.0, %v210
      %212 = vst [vmem:[#allocation12] sm:$0x3] %v211
    $region25: #{tpu_custom_call.1} parent=1 // pred_fallthru
      _
    // Predicated region
    $region26: #{tpu_custom_call.1} parent=1 // pred_check
      _
    $region27: #{tpu_custom_call.1} parent=1 // pred_check_branch
      %214 = sbr.rel (0) target = $region29
    $region28: #{tpu_custom_call.1} parent=1 // pred_region
      %s216 = ssub.s32 32, 32
      %217 = vsyncadd [#allocation9], %s216
      %s219 = sshll.u32 [#allocation12], 4
      %s220 = int_to_ptr.vmem [resolvable:$true] %s219
      %222 = dma.vmem_to_hbm [thread:$0]  %s220, 32, %s2, [#allocation9]
    $region29: #{tpu_custom_call.1} parent=1 // pred_fallthru
      _
    // Predicated region
    $region30: #{tpu_custom_call.1} parent=1 // pred_check
      _
    $region31: #{tpu_custom_call.1} parent=1 // pred_check_branch
      %224 = sbr.rel (0) target = $region33
    $region32: #{tpu_custom_call.1} parent=1 // pred_region
      %225 = dma.done [#allocation9], 32
    $region33: #{tpu_custom_call.1} parent=1 // pred_fallthru
      _
    %226 = vsyncpa [#allocation8], 1
    %227 = vsyncpa [#allocation11], 1
    %228 = vsyncpa [#allocation9], 1

</llo_original>
